<compile_context>
chip_gen: v5e
topology: v5e:2x2
jax: 0.10.0
libtpu: 0.0.40
codegen_flags: <defaults>
</compile_context>

<pallas_src>
import functools
from collections import namedtuple

import jax
import jax.numpy as jnp
from jax.experimental import pallas as pl
from jax.experimental.pallas import tpu as pltpu

_LANE = 128
_SUBLANE = 8


def _round_up(v, m):
    return (v + m - 1) // m * m


def _cdiv(a, b):
    return -(-a // b)


# ----------------------------- kernel body -----------------------------------
def _mlp_kernel(x_ref, w0_ref, w1_ref, w2_ref, b_ref, o_ref, *, d0, d1, d2):
    """Fused 3-layer MLP on one (TM, d_in_pad) batch tile.

    MXU matmuls accumulate in f32 (preferred_element_type); bias-add + ReLU run in
    f32 on the VPU and the activation is cast back to the weight dtype only to feed
    the next MXU pass.  Dropout is identity (eval mode).
    """
    # layer 0: Linear + ReLU  (+ Dropout == identity in eval mode)
    h = jnp.dot(x_ref[...], w0_ref[...], preferred_element_type=jnp.float32)
    h = jnp.maximum(h + b_ref[0:1, :d0], 0.0)
    # TODO(synk): training-mode dropout (pltpu.prng_random_bits mask + 1/(1-p)) not implemented.

    # layer 1: Linear + ReLU  (+ Dropout == identity in eval mode)
    h = jnp.dot(h.astype(w1_ref.dtype), w1_ref[...],
                preferred_element_type=jnp.float32)
    h = jnp.maximum(h + b_ref[1:2, :d1], 0.0)

    # output layer: Linear + ReLU
    h = jnp.dot(h.astype(w2_ref.dtype), w2_ref[...],
                preferred_element_type=jnp.float32)
    o_ref[...] = jnp.maximum(h + b_ref[2:3, :d2], 0.0).astype(o_ref.dtype)


# ----------------------- one-time parameter preparation ----------------------
PreparedMLP = namedtuple("PreparedMLP", ["w0", "w1", "w2", "bias", "out_dim"])


def prepare_params(params, *, compute_dtype=jnp.float32):
    """Pad / pack / cast weights ONCE (hoisted out of the per-call forward path).

    params = [(w0, b0), (w1, b1), (w2, b2)] with w: (in, out), b: (out,).
    compute_dtype: dtype fed to the MXU.  bf16 is recommended on v5e/v6e/v7x (f32
      accumulation and f32 bias/ReLU epilogue are unchanged; halves HBM/VMEM traffic).
    TODO(synk): optional fp8 weight path for v7x (per-out-channel scales folded into
      the f32 bias epilogue) not implemented.
    """
    (w0, b0), (w1, b1), (w2, b2) = params

    def pad_w(w):
        r = _round_up(w.shape[0], _LANE)
        c = _round_up(w.shape[1], _LANE)
        return jnp.zeros((r, c), compute_dtype).at[:w.shape[0], :w.shape[1]].set(
            w.astype(compute_dtype))

    w0p, w1p, w2p = pad_w(w0), pad_w(w1), pad_w(w2)

    # Pack the three biases into one (3, P) f32 buffer (single small DMA).
    bmax = max(w0p.shape[1], w1p.shape[1], w2p.shape[1])
    bias = jnp.zeros((3, bmax), jnp.float32)
    bias = bias.at[0, :b0.shape[0]].set(b0.astype(jnp.float32))
    bias = bias.at[1, :b1.shape[0]].set(b1.astype(jnp.float32))
    bias = bias.at[2, :b2.shape[0]].set(b2.astype(jnp.float32))

    return PreparedMLP(w0p, w1p, w2p, bias, int(w2.shape[1]))


# ------------------------------ forward wrapper -------------------------------
def _vmem_cap_bytes():
    phys = 64 << 20  # assume the smallest (v7x per-TC) if the query fails
    try:
        phys = int(getattr(pltpu.get_tpu_info(), "vmem_capacity_bytes", phys))
    except Exception:
        pass
    # ~20 MiB headroom for compiler scratch: ~108 MiB on v5e/v6e, ~44 MiB on v7x.
    return max(32 << 20, phys - (20 << 20))


def mlp_forward(x, prep, *, tm=None):
    """x: (n, in_channels) -> (n, out_channels).  prep = prepare_params(params)."""
    n, d_in = x.shape
    w0p, w1p, w2p, bias = prep.w0, prep.w1, prep.w2, prep.bias
    d_in_p, d0_p = w0p.shape
    d1_p, d2_p = w1p.shape[1], w2p.shape[1]
    bmax = bias.shape[1]
    cdt = w0p.dtype
    out_dtype = x.dtype
    w_itm = jnp.dtype(cdt).itemsize
    o_itm = jnp.dtype(out_dtype).itemsize
    hmax = max(d0_p, d1_p, d2_p)

    # ---- generation-aware VMEM budget ---------------------------------------
    vmem_cap = _vmem_cap_bytes()
    # Constant-index operands are still double-buffered by default -> budget 2x.
    # (pipeline_mode=pl.Buffered(1) could halve this; we budget conservatively.)
    resident = 2 * ((w0p.size + w1p.size + w2p.size) * w_itm + _SUBLANE * bmax * 4)
    per_row = 2 * d_in_p * w_itm + 2 * d2_p * o_itm + 3 * hmax * 4
    if resident + _SUBLANE * per_row + (2 << 20) > vmem_cap:
        raise ValueError(
            f"Resident weights ({resident / 2**20:.1f} MiB incl. double-buffering) "
            f"exceed the {vmem_cap / 2**20:.0f} MiB VMEM budget for this TPU "
            "generation. TODO(synk): N-tile the widest layer for very large hidden dims.")

    # ---- balanced, VMEM-derived batch tiles ----------------------------------
    n8 = _round_up(n, _SUBLANE)
    if tm is None:
        budget_rows = (vmem_cap - resident - (2 << 20)) // per_row
        tm_cap = max(_SUBLANE, min(512, (budget_rows // _SUBLANE) * _SUBLANE))
    else:
        tm_cap = _round_up(tm, _SUBLANE)
    tiles = _cdiv(n8, tm_cap)
    if tiles < 2 and n8 >= 2 * _SUBLANE:
        tiles = 2          # keep both v7x TensorCores busy on the parallel axis
    tm = _round_up(_cdiv(n8, tiles), _SUBLANE)
    n_p = tiles * tm

    # ---- pad only x per call (weights/bias were prepared once) ---------------
    xp = jnp.zeros((n_p, d_in_p), cdt).at[:n, :d_in].set(x.astype(cdt))

    vmem_est = resident + tm * per_row + tm * hmax * 4
    vmem_limit = min(max(int(vmem_est * 1.3) + (2 << 20), 4 << 20), vmem_cap)

    kernel = functools.partial(_mlp_kernel, d0=d0_p, d1=d1_p, d2=d2_p)

    out_p = pl.pallas_call(
        kernel,
        out_shape=jax.ShapeDtypeStruct((n_p, d2_p), out_dtype),
        grid=(n_p // tm,),
        in_specs=[
            pl.BlockSpec((tm, d_in_p), lambda i: (i, 0)),     # x: batch-tiled
            pl.BlockSpec((d_in_p, d0_p), lambda i: (0, 0)),   # weights: VMEM-resident
            pl.BlockSpec((d0_p, d1_p), lambda i: (0, 0)),
            pl.BlockSpec((d1_p, d2_p), lambda i: (0, 0)),
            pl.BlockSpec((3, bmax), lambda i: (0, 0)),        # packed biases
        ],
        out_specs=pl.BlockSpec((tm, d2_p), lambda i: (i, 0)),
        compiler_params=pltpu.CompilerParams(
            dimension_semantics=("parallel",),
            vmem_limit_bytes=vmem_limit,
        ),
    )(xp, w0p, w1p, w2p, bias)

    return out_p[:n, :prep.out_dim]


# ------------------------------ reference & init ------------------------------
def init_params(key, in_channels, hidden_dims, out_channels, dtype=jnp.float32):
    """Deterministic PyTorch-style (Kaiming-uniform-ish) init, weights stored (in, out)."""
    dims = [in_channels] + list(hidden_dims) + [out_channels]
    params = []
    for din, dout in zip(dims[:-1], dims[1:]):
        key, kw, kb = jax.random.split(key, 3)
        bound = 1.0 / (din ** 0.5)
        w = jax.random.uniform(kw, (din, dout), dtype, minval=-bound, maxval=bound)
        b = jax.random.uniform(kb, (dout,), dtype, minval=-bound, maxval=bound)
        params.append((w, b))
    return params


def mlp_reference(x, params):
    h = x
    for w, b in params:
        h = jnp.maximum(h @ w + b, 0.0)  # ReLU after every Linear (incl. last)
    return h


if __name__ == "__main__":
    key = jax.random.PRNGKey(0)
    in_channels, hidden_dims, out_channels = 34, [64, 32], 34

    kx, kx2, kp = jax.random.split(key, 3)
    params = init_params(kp, in_channels, hidden_dims, out_channels)

    # f32 path (exact semantics of the PyTorch module in eval mode), single tile.
    prep_f32 = prepare_params(params, compute_dtype=jnp.float32)
    x = jax.random.normal(kx, (8, in_channels), jnp.float32)
    ref = mlp_reference(x, params)
    out = jax.block_until_ready(mlp_forward(x, prep_f32))
    assert out.shape == (8, out_channels), out.shape
    assert jnp.allclose(out, ref, atol=1e-5, rtol=1e-5), "f32 mismatch vs reference"

    # Multi-tile path (grid >= 2 so both v7x TCs run); exercises in-tile row padding.
    x2 = jax.random.normal(kx2, (20, in_channels), jnp.float32)
    ref2 = mlp_reference(x2, params)
    out2 = jax.block_until_ready(mlp_forward(x2, prep_f32))
    assert out2.shape == (20, out_channels), out2.shape
    assert jnp.allclose(out2, ref2, atol=1e-5, rtol=1e-5), "f32 multi-tile mismatch"

    # bf16 MXU-operand path (recommended on v5e/v6e/v7x); f32 accumulation + epilogue.
    prep_bf16 = prepare_params(params, compute_dtype=jnp.bfloat16)
    out_bf16 = jax.block_until_ready(mlp_forward(x, prep_bf16))
    assert out_bf16.shape == (8, out_channels), out_bf16.shape
    assert jnp.allclose(out_bf16.astype(jnp.float32), ref, atol=5e-2, rtol=5e-2), \
        "bf16 mismatch vs reference"

    print("KERNEL_OK")
</pallas_src>

<mosaic_0001>
module attributes {stable_mosaic.version = 11 : i64} {
  func.func @_mlp_kernel(%arg0: i32, %arg1: memref<8x128xf32, #tpu.memory_space<vmem>>, %arg2: memref<128x128xf32, #tpu.memory_space<vmem>>, %arg3: memref<128x128xf32, #tpu.memory_space<vmem>>, %arg4: memref<128x128xf32, #tpu.memory_space<vmem>>, %arg5: memref<3x128xf32, #tpu.memory_space<vmem>>, %arg6: memref<8x128xf32, #tpu.memory_space<vmem>>) attributes {dimension_semantics = [#tpu.dimension_semantics<parallel>], iteration_bounds = array<i64: 1>, scalar_prefetch = 0 : i64, scratch_operands = 0 : i64, tpu.core_type = #tpu.core_type<tc>, window_params = [{transform_indices = @transform_0, window_bounds = array<i64: 8, 128>}, {pipeline_mode = #tpu.pipeline_mode<synchronous>, transform_indices = @transform_1, window_bounds = array<i64: 128, 128>}, {pipeline_mode = #tpu.pipeline_mode<synchronous>, transform_indices = @transform_2, window_bounds = array<i64: 128, 128>}, {pipeline_mode = #tpu.pipeline_mode<synchronous>, transform_indices = @transform_3, window_bounds = array<i64: 128, 128>}, {pipeline_mode = #tpu.pipeline_mode<synchronous>, transform_indices = @transform_4, window_bounds = array<i64: 3, 128>}, {transform_indices = @transform_5, window_bounds = array<i64: 8, 128>}]} {
    %c0 = arith.constant 0 : index
    %c0_0 = arith.constant 0 : index
    %0 = vector.load %arg1[%c0, %c0_0] : memref<8x128xf32, #tpu.memory_space<vmem>>, vector<8x128xf32>
    %c0_1 = arith.constant 0 : index
    %c0_2 = arith.constant 0 : index
    %1 = vector.load %arg2[%c0_1, %c0_2] : memref<128x128xf32, #tpu.memory_space<vmem>>, vector<128x128xf32>
    %cst = arith.constant dense<0.000000e+00> : vector<8x128xf32>
    %2 = tpu.matmul %0, %1, %cst {dimension_numbers = #tpu.dot_dimension_numbers<[1], [0], [0], [1], [0, 0, 1, 1], [], []>} : vector<8x128xf32>, vector<128x128xf32>, vector<8x128xf32> -> vector<8x128xf32>
    %c0_3 = arith.constant 0 : index
    %c0_4 = arith.constant 0 : index
    %3 = vector.load %arg5[%c0_3, %c0_4] : memref<3x128xf32, #tpu.memory_space<vmem>>, vector<1x128xf32>
    %4 = vector.broadcast %3 : vector<1x128xf32> to vector<8x128xf32>
    %5 = arith.addf %2, %4 : vector<8x128xf32>
    %cst_5 = arith.constant 0.000000e+00 : f32
    %6 = vector.broadcast %cst_5 : f32 to vector<8x128xf32>
    %7 = arith.maximumf %5, %6 : vector<8x128xf32>
    %c0_6 = arith.constant 0 : index
    %c0_7 = arith.constant 0 : index
    %8 = vector.load %arg3[%c0_6, %c0_7] : memref<128x128xf32, #tpu.memory_space<vmem>>, vector<128x128xf32>
    %cst_8 = arith.constant dense<0.000000e+00> : vector<8x128xf32>
    %9 = tpu.matmul %7, %8, %cst_8 {dimension_numbers = #tpu.dot_dimension_numbers<[1], [0], [0], [1], [0, 0, 1, 1], [], []>} : vector<8x128xf32>, vector<128x128xf32>, vector<8x128xf32> -> vector<8x128xf32>
    %c1 = arith.constant 1 : index
    %c0_9 = arith.constant 0 : index
    %10 = vector.load %arg5[%c1, %c0_9] : memref<3x128xf32, #tpu.memory_space<vmem>>, vector<1x128xf32>
    %11 = vector.broadcast %10 : vector<1x128xf32> to vector<8x128xf32>
    %12 = arith.addf %9, %11 : vector<8x128xf32>
    %cst_10 = arith.constant 0.000000e+00 : f32
    %13 = vector.broadcast %cst_10 : f32 to vector<8x128xf32>
    %14 = arith.maximumf %12, %13 : vector<8x128xf32>
    %c0_11 = arith.constant 0 : index
    %c0_12 = arith.constant 0 : index
    %15 = vector.load %arg4[%c0_11, %c0_12] : memref<128x128xf32, #tpu.memory_space<vmem>>, vector<128x128xf32>
    %cst_13 = arith.constant dense<0.000000e+00> : vector<8x128xf32>
    %16 = tpu.matmul %14, %15, %cst_13 {dimension_numbers = #tpu.dot_dimension_numbers<[1], [0], [0], [1], [0, 0, 1, 1], [], []>} : vector<8x128xf32>, vector<128x128xf32>, vector<8x128xf32> -> vector<8x128xf32>
    %c2 = arith.constant 2 : index
    %c0_14 = arith.constant 0 : index
    %17 = vector.load %arg5[%c2, %c0_14] : memref<3x128xf32, #tpu.memory_space<vmem>>, vector<1x128xf32>
    %18 = vector.broadcast %17 : vector<1x128xf32> to vector<8x128xf32>
    %19 = arith.addf %16, %18 : vector<8x128xf32>
    %cst_15 = arith.constant 0.000000e+00 : f32
    %20 = vector.broadcast %cst_15 : f32 to vector<8x128xf32>
    %21 = arith.maximumf %19, %20 : vector<8x128xf32>
    %c0_16 = arith.constant 0 : index
    %c0_17 = arith.constant 0 : index
    %22 = vector.load %arg6[%c0_16, %c0_17] : memref<8x128xf32, #tpu.memory_space<vmem>>, vector<8x128xf32>
    tpu.vector_store %arg6[%c0_16, %c0_17], %21 {strides = array<i32>} : memref<8x128xf32, #tpu.memory_space<vmem>>, vector<8x128xf32>,
    return
  }
  func.func @transform_0(%arg0: i32) -> (i32, i32) {
    %c0_i32 = arith.constant 0 : i32
    %c0_i32_0 = arith.constant 0 : i32
    return %arg0, %c0_i32 : i32, i32
  }
  func.func @transform_1(%arg0: i32) -> (i32, i32) {
    %c0_i32 = arith.constant 0 : i32
    %c0_i32_0 = arith.constant 0 : i32
    %c0_i32_1 = arith.constant 0 : i32
    return %c0_i32, %c0_i32_0 : i32, i32
  }
  func.func @transform_2(%arg0: i32) -> (i32, i32) {
    %c0_i32 = arith.constant 0 : i32
    %c0_i32_0 = arith.constant 0 : i32
    %c0_i32_1 = arith.constant 0 : i32
    return %c0_i32, %c0_i32_0 : i32, i32
  }
  func.func @transform_3(%arg0: i32) -> (i32, i32) {
    %c0_i32 = arith.constant 0 : i32
    %c0_i32_0 = arith.constant 0 : i32
    %c0_i32_1 = arith.constant 0 : i32
    return %c0_i32, %c0_i32_0 : i32, i32
  }
  func.func @transform_4(%arg0: i32) -> (i32, i32) {
    %c0_i32 = arith.constant 0 : i32
    %c0_i32_0 = arith.constant 0 : i32
    %c0_i32_1 = arith.constant 0 : i32
    return %c0_i32, %c0_i32_0 : i32, i32
  }
  func.func @transform_5(%arg0: i32) -> (i32, i32) {
    %c0_i32 = arith.constant 0 : i32
    %c0_i32_0 = arith.constant 0 : i32
    return %arg0, %c0_i32 : i32, i32
  }
}

</mosaic_0001>

<llo_original>
// kernel: tpu_custom_call.1
$region0: #{tpu_custom_call.1}
  #allocation0 [shape = 'u32[]', space=smem, size = 0x4, offset = 0x4, fixed_abs, tag = 'smem constant byte address 0x4 - core index']
  #allocation1 [shape = 'u32[72,128]{1,0:T(1,128)}', space=vmem, size = 0x9000, scoped, tag = 'internal scratch']
  %s0 = inlined_call_operand.hbm [shape: f32[8,128], index: 0, kind: input, shape index: {}]
  %s1 = inlined_call_operand.hbm [shape: f32[128,128], index: 1, kind: input, shape index: {}]
  %s2 = inlined_call_operand.hbm [shape: f32[128,128], index: 2, kind: input, shape index: {}]
  %s3 = inlined_call_operand.hbm [shape: f32[128,128], index: 3, kind: input, shape index: {}]
  %s4 = inlined_call_operand.hbm [shape: f32[3,128], index: 4, kind: input, shape index: {}]
  %s5 = inlined_call_operand.hbm [shape: f32[8,128], index: 5, kind: output, shape index: {}]
  %s6 = sld [smem:[#allocation0]]
  $region50: #{tpu_custom_call.1} parent=0
    _
  %s8 = ssub.s32 1, %s6
  %s9 = scalar_select 0, %s8, %s6
  $region1: #{tpu_custom_call.1} parent=0
    #allocation2 [shape = 'u8[4096]{0}', space=vmem, size = 0x1000, scoped, tag = 'input window, operand 0, single buffered']
    #allocation3 [shape = 's32[1]{0}', space=sflag, size = 0x4, scoped, tag = 'scoped memory for tpu_custom_call.1']
    #allocation4 [shape = 's32[1]{0}', space=sflag, size = 0x4, scoped, tag = 'scoped memory for tpu_custom_call.1']
    #allocation5 [shape = 'u8[65536]{0}', space=vmem, size = 0x10000, scoped, tag = 'input window, operand 1, single buffered']
    #allocation6 [shape = 's32[1]{0}', space=sflag, size = 0x4, scoped, tag = 'scoped memory for tpu_custom_call.1']
    #allocation7 [shape = 'u8[65536]{0}', space=vmem, size = 0x10000, scoped, tag = 'input window, operand 2, single buffered']
    #allocation8 [shape = 'u8[65536]{0}', space=vmem, size = 0x10000, scoped, tag = 'input window, operand 3, single buffered']
    #allocation9 [shape = 's32[1]{0}', space=sflag, size = 0x4, scoped, tag = 'scoped memory for tpu_custom_call.1']
    #allocation10 [shape = 'u8[2048]{0}', space=vmem, size = 0x800, scoped, tag = 'input window, operand 4, single buffered']
    #allocation11 [shape = 'u8[4096]{0}', space=vmem, size = 0x1000, scoped, tag = 'output window, operand 0, single buffered']
    %10 = vsyncpa [#allocation3], 0
    %11 = vsyncpa [#allocation6], 0
    %12 = vsyncpa [#allocation9], 0
    %13 = vsyncpa [#allocation4], 0
    // Predicated region
    $region2: #{tpu_custom_call.1} parent=1 // pred_check
      _
    $region3: #{tpu_custom_call.1} parent=1 // pred_check_branch
      %15 = sbr.rel (0) target = $region5
    $region4: #{tpu_custom_call.1} parent=1 // pred_region
      %17 = vsyncadd [#allocation3], 0
      %s19 = sshll.u32 %s0, 4
      %s20 = int_to_ptr.hbm [resolvable:$true] %s19
      %s21 = sshll.u32 [#allocation2], 4
      %s22 = int_to_ptr.vmem [resolvable:$true] %s21
      %24 = dma.hbm_to_vmem [thread:$0]  %s20, 128, %s22, [#allocation3]
    $region5: #{tpu_custom_call.1} parent=1 // pred_fallthru
      _
    // Predicated region
    $region6: #{tpu_custom_call.1} parent=1 // pred_check
      _
    $region7: #{tpu_custom_call.1} parent=1 // pred_check_branch
      %26 = sbr.rel (0) target = $region9
    $region8: #{tpu_custom_call.1} parent=1 // pred_region
      %28 = vsyncadd [#allocation6], 0
      %s29 = sshll.u32 %s1, 4
      %s30 = int_to_ptr.hbm [resolvable:$true] %s29
      %s31 = sshll.u32 [#allocation5], 4
      %s32 = int_to_ptr.vmem [resolvable:$true] %s31
      %37 = dma.hbm_to_vmem [thread:$0]  %s30, 2048, %s32, [#allocation6], 128, 128, 8
    $region9: #{tpu_custom_call.1} parent=1 // pred_fallthru
      _
    // Predicated region
    $region10: #{tpu_custom_call.1} parent=1 // pred_check
      _
    $region11: #{tpu_custom_call.1} parent=1 // pred_check_branch
      %39 = sbr.rel (0) target = $region13
    $region12: #{tpu_custom_call.1} parent=1 // pred_region
      %41 = vsyncadd [#allocation6], 0
      %s42 = sshll.u32 %s2, 4
      %s43 = int_to_ptr.hbm [resolvable:$true] %s42
      %s44 = sshll.u32 [#allocation7], 4
      %s45 = int_to_ptr.vmem [resolvable:$true] %s44
      %50 = dma.hbm_to_vmem [thread:$0]  %s43, 2048, %s45, [#allocation6], 128, 128, 8
    $region13: #{tpu_custom_call.1} parent=1 // pred_fallthru
      _
    // Predicated region
    $region14: #{tpu_custom_call.1} parent=1 // pred_check
      _
    $region15: #{tpu_custom_call.1} parent=1 // pred_check_branch
      %52 = sbr.rel (0) target = $region17
    $region16: #{tpu_custom_call.1} parent=1 // pred_region
      %54 = vsyncadd [#allocation9], 0
      %s55 = sshll.u32 %s3, 4
      %s56 = int_to_ptr.hbm [resolvable:$true] %s55
      %s57 = sshll.u32 [#allocation8], 4
      %s58 = int_to_ptr.vmem [resolvable:$true] %s57
      %63 = dma.hbm_to_vmem [thread:$0]  %s56, 2048, %s58, [#allocation9], 128, 128, 8
    $region17: #{tpu_custom_call.1} parent=1 // pred_fallthru
      _
    // Predicated region
    $region18: #{tpu_custom_call.1} parent=1 // pred_check
      _
    $region19: #{tpu_custom_call.1} parent=1 // pred_check_branch
      %65 = sbr.rel (0) target = $region21
    $region20: #{tpu_custom_call.1} parent=1 // pred_region
      %67 = vsyncadd [#allocation9], 0
      %s69 = sshll.u32 %s4, 4
      %s70 = int_to_ptr.hbm [resolvable:$true] %s69
      %s71 = sshll.u32 [#allocation10], 4
      %s72 = int_to_ptr.vmem [resolvable:$true] %s71
      %74 = dma.hbm_to_vmem [thread:$0]  %s70, 64, %s72, [#allocation9]
    $region21: #{tpu_custom_call.1} parent=1 // pred_fallthru
      _
    // Predicated region
    $region22: #{tpu_custom_call.1} parent=1 // pred_check
      _
    $region23: #{tpu_custom_call.1} parent=1 // pred_check_branch
      %76 = sbr.rel (0) target = $region25
    $region24: #{tpu_custom_call.1} parent=1 // pred_region
      %78 = dma.done [#allocation3], 128
    $region25: #{tpu_custom_call.1} parent=1 // pred_fallthru
      _
    // Predicated region
    $region26: #{tpu_custom_call.1} parent=1 // pred_check
      _
    $region27: #{tpu_custom_call.1} parent=1 // pred_check_branch
      %80 = sbr.rel (0) target = $region29
    $region28: #{tpu_custom_call.1} parent=1 // pred_region
      %82 = dma.done [#allocation6], 2048
    $region29: #{tpu_custom_call.1} parent=1 // pred_fallthru
      _
    // Predicated region
    $region30: #{tpu_custom_call.1} parent=1 // pred_check
      _
    $region31: #{tpu_custom_call.1} parent=1 // pred_check_branch
      %84 = sbr.rel (0) target = $region33
    $region32: #{tpu_custom_call.1} parent=1 // pred_region
      %86 = dma.done [#allocation6], 2048
    $region33: #{tpu_custom_call.1} parent=1 // pred_fallthru
      _
    // Predicated region
    $region34: #{tpu_custom_call.1} parent=1 // pred_check
      _
    $region35: #{tpu_custom_call.1} parent=1 // pred_check_branch
      %88 = sbr.rel (0) target = $region37
    $region36: #{tpu_custom_call.1} parent=1 // pred_region
      %90 = dma.done [#allocation9], 2048
    $region37: #{tpu_custom_call.1} parent=1 // pred_fallthru
      _
    // Predicated region
    $region38: #{tpu_custom_call.1} parent=1 // pred_check
      _
    $region39: #{tpu_custom_call.1} parent=1 // pred_check_branch
      %92 = sbr.rel (0) target = $region41
    $region40: #{tpu_custom_call.1} parent=1 // pred_region
      %94 = dma.done [#allocation9], 64
    $region41: #{tpu_custom_call.1} parent=1 // pred_fallthru
      _
    %v95 = vld [vmem:[#allocation2] sm:$0xff]
    %v96 = vld [vmem:[#allocation5] sm:$0xff]
    %v97 = vld [vmem:[#allocation5 + $0x8] sm:$0xff]
    %v98 = vld [vmem:[#allocation5 + $0x10] sm:$0xff]
    %v99 = vld [vmem:[#allocation5 + $0x18] sm:$0xff]
    %v100 = vld [vmem:[#allocation5 + $0x20] sm:$0xff]
    %v101 = vld [vmem:[#allocation5 + $0x28] sm:$0xff]
    %v102 = vld [vmem:[#allocation5 + $0x30] sm:$0xff]
    %v103 = vld [vmem:[#allocation5 + $0x38] sm:$0xff]
    %v104 = vld [vmem:[#allocation5 + $0x40] sm:$0xff]
    %v105 = vld [vmem:[#allocation5 + $0x48] sm:$0xff]
    %v106 = vld [vmem:[#allocation5 + $0x50] sm:$0xff]
    %v107 = vld [vmem:[#allocation5 + $0x58] sm:$0xff]
    %v108 = vld [vmem:[#allocation5 + $0x60] sm:$0xff]
    %v109 = vld [vmem:[#allocation5 + $0x68] sm:$0xff]
    %v110 = vld [vmem:[#allocation5 + $0x70] sm:$0xff]
    %v111 = vld [vmem:[#allocation5 + $0x78] sm:$0xff]
    %v112 = vld [vmem:[#allocation10] sm:$0x1]
    %v113 = vperm.slane %v112, 0
    %114 = vmatpush.msra.mxu0 %v111
    %115 = vmatpush.msra.mxu0 %v110
    %116 = vmatpush.msra.mxu0 %v109
    %117 = vmatpush.msra.mxu0 %v108
    %118 = vmatpush.msra.mxu0 %v107
    %119 = vmatpush.msra.mxu0 %v106
    %120 = vmatpush.msra.mxu0 %v105
    %121 = vmatpush.msra.mxu0 %v104
    %122 = vmatpush.msra.mxu0 %v103
    %123 = vmatpush.msra.mxu0 %v102
    %124 = vmatpush.msra.mxu0 %v101
    %125 = vmatpush.msra.mxu0 %v100
    %126 = vmatpush.msra.mxu0 %v99
    %127 = vmatpush.msra.mxu0 %v98
    %128 = vmatpush.msra.mxu0 %v97
    %129 = vmatpush.msra.mxu0 %v96
    %130 = vmatmul.f32.gmra.mxu0 %v95
    %v131 = vpop.f32.mrf.mxu0
    %v132 = vadd.f32 %v113, %v131
    %133 = vdwg.mxu0
    %v134 = vmax.f32 %v132, 0.0
    %v135 = vld [vmem:[#allocation7] sm:$0xff]
    %v136 = vld [vmem:[#allocation7 + $0x8] sm:$0xff]
    %v137 = vld [vmem:[#allocation7 + $0x10] sm:$0xff]
    %v138 = vld [vmem:[#allocation7 + $0x18] sm:$0xff]
    %v139 = vld [vmem:[#allocation7 + $0x20] sm:$0xff]
    %v140 = vld [vmem:[#allocation7 + $0x28] sm:$0xff]
    %v141 = vld [vmem:[#allocation7 + $0x30] sm:$0xff]
    %v142 = vld [vmem:[#allocation7 + $0x38] sm:$0xff]
    %v143 = vld [vmem:[#allocation7 + $0x40] sm:$0xff]
    %v144 = vld [vmem:[#allocation7 + $0x48] sm:$0xff]
    %v145 = vld [vmem:[#allocation7 + $0x50] sm:$0xff]
    %v146 = vld [vmem:[#allocation7 + $0x58] sm:$0xff]
    %v147 = vld [vmem:[#allocation7 + $0x60] sm:$0xff]
    %v148 = vld [vmem:[#allocation7 + $0x68] sm:$0xff]
    %v149 = vld [vmem:[#allocation7 + $0x70] sm:$0xff]
    %v150 = vld [vmem:[#allocation7 + $0x78] sm:$0xff]
    %v151 = vld [vmem:[#allocation10 + $0x1] sm:$0x1]
    %v152 = vperm.slane %v151, 0
    %153 = vmatpush.msra.mxu0 %v150
    %154 = vmatpush.msra.mxu0 %v149
    %155 = vmatpush.msra.mxu0 %v148
    %156 = vmatpush.msra.mxu0 %v147
    %157 = vmatpush.msra.mxu0 %v146
    %158 = vmatpush.msra.mxu0 %v145
    %159 = vmatpush.msra.mxu0 %v144
    %160 = vmatpush.msra.mxu0 %v143
    %161 = vmatpush.msra.mxu0 %v142
    %162 = vmatpush.msra.mxu0 %v141
    %163 = vmatpush.msra.mxu0 %v140
    %164 = vmatpush.msra.mxu0 %v139
    %165 = vmatpush.msra.mxu0 %v138
    %166 = vmatpush.msra.mxu0 %v137
    %167 = vmatpush.msra.mxu0 %v136
    %168 = vmatpush.msra.mxu0 %v135
    %169 = vmatmul.f32.gmra.mxu0 %v134
    %v170 = vpop.f32.mrf.mxu0
    %v171 = vadd.f32 %v152, %v170
    %172 = vdwg.mxu0
    %v173 = vmax.f32 %v171, 0.0
    %v174 = vld [vmem:[#allocation8] sm:$0xff]
    %v175 = vld [vmem:[#allocation8 + $0x8] sm:$0xff]
    %v176 = vld [vmem:[#allocation8 + $0x10] sm:$0xff]
    %v177 = vld [vmem:[#allocation8 + $0x18] sm:$0xff]
    %v178 = vld [vmem:[#allocation8 + $0x20] sm:$0xff]
    %v179 = vld [vmem:[#allocation8 + $0x28] sm:$0xff]
    %v180 = vld [vmem:[#allocation8 + $0x30] sm:$0xff]
    %v181 = vld [vmem:[#allocation8 + $0x38] sm:$0xff]
    %v182 = vld [vmem:[#allocation8 + $0x40] sm:$0xff]
    %v183 = vld [vmem:[#allocation8 + $0x48] sm:$0xff]
    %v184 = vld [vmem:[#allocation8 + $0x50] sm:$0xff]
    %v185 = vld [vmem:[#allocation8 + $0x58] sm:$0xff]
    %v186 = vld [vmem:[#allocation8 + $0x60] sm:$0xff]
    %v187 = vld [vmem:[#allocation8 + $0x68] sm:$0xff]
    %v188 = vld [vmem:[#allocation8 + $0x70] sm:$0xff]
    %v189 = vld [vmem:[#allocation8 + $0x78] sm:$0xff]
    %v190 = vld [vmem:[#allocation10 + $0x2] sm:$0x1]
    %v191 = vperm.slane %v190, 0
    %192 = vmatpush.msra.mxu0 %v189
    %193 = vmatpush.msra.mxu0 %v188
    %194 = vmatpush.msra.mxu0 %v187
    %195 = vmatpush.msra.mxu0 %v186
    %196 = vmatpush.msra.mxu0 %v185
    %197 = vmatpush.msra.mxu0 %v184
    %198 = vmatpush.msra.mxu0 %v183
    %199 = vmatpush.msra.mxu0 %v182
    %200 = vmatpush.msra.mxu0 %v181
    %201 = vmatpush.msra.mxu0 %v180
    %202 = vmatpush.msra.mxu0 %v179
    %203 = vmatpush.msra.mxu0 %v178
    %204 = vmatpush.msra.mxu0 %v177
    %205 = vmatpush.msra.mxu0 %v176
    %206 = vmatpush.msra.mxu0 %v175
    %207 = vmatpush.msra.mxu0 %v174
    %208 = vmatmul.f32.gmra.mxu0 %v173
    %v209 = vpop.f32.mrf.mxu0
    %v210 = vadd.f32 %v191, %v209
    %211 = vdwg.mxu0
    %v212 = vmax.f32 %v210, 0.0
    %213 = vst [vmem:[#allocation11] sm:$0xff] %v212
    // Predicated region
    $region42: #{tpu_custom_call.1} parent=1 // pred_check
      _
    $region43: #{tpu_custom_call.1} parent=1 // pred_check_branch
      %215 = sbr.rel (0) target = $region45
    $region44: #{tpu_custom_call.1} parent=1 // pred_region
      %217 = vsyncadd [#allocation4], 0
      %s219 = sshll.u32 [#allocation11], 4
      %s220 = int_to_ptr.vmem [resolvable:$true] %s219
      %s221 = sshll.u32 %s5, 4
      %s222 = int_to_ptr.hbm [resolvable:$true] %s221
      %224 = dma.vmem_to_hbm [thread:$0]  %s220, 128, %s222, [#allocation4]
    $region45: #{tpu_custom_call.1} parent=1 // pred_fallthru
      _
    // Predicated region
    $region46: #{tpu_custom_call.1} parent=1 // pred_check
      _
    $region47: #{tpu_custom_call.1} parent=1 // pred_check_branch
      %226 = sbr.rel (0) target = $region49
    $region48: #{tpu_custom_call.1} parent=1 // pred_region
      %228 = dma.done [#allocation4], 128
    $region49: #{tpu_custom_call.1} parent=1 // pred_fallthru
      _
    %229 = vsyncpa [#allocation3], 1
    %230 = vsyncpa [#allocation6], 1
    %231 = vsyncpa [#allocation9], 1
    %232 = vsyncpa [#allocation4], 1

</llo_original>
